<compile_context>
chip_gen: v7x
topology: tpu7x:2x2x1
jax: 0.10.0
libtpu: 0.0.40
codegen_flags: <defaults>
</compile_context>

<pallas_src>
import jax
import jax.numpy as jnp
from jax.experimental import pallas as pl
from jax.experimental.pallas import tpu as pltpu


_MAX_BATCH_TILE = 512  # rows per grid step; safe for v7x's 64 MiB VMEM, >=2 steps for big B


def _elu(v):
    # F.elu with alpha=1.0: v if v > 0 else exp(v) - 1
    return jnp.where(v > 0, v, jnp.exp(v) - 1.0)


def _encoder_ipm_kernel(x_ref, c_ref, eps_ref,
                        w1x_ref, w1c_ref, b1_ref,
                        w2x_ref, w2h_ref, b2_ref,
                        wmx_ref, wmh_ref, bm_ref,
                        wlx_ref, wlh_ref, bl_ref,
                        z_ref, mu_ref, logvar_ref):
    """Fused Encoder_IPM forward on one (TB, feat) batch tile.

    Matmuls hit the MXU with f32 accumulation; ELU / tanh / exp epilogue runs on
    the VPU/EUP in the same invocation. cat(x, .) @ W is split into two matmuls.
    """
    x = x_ref[...]
    c = c_ref[...]

    # h1 = ELU(fc1(cat(x, c)))
    h1 = (jnp.dot(x, w1x_ref[...], preferred_element_type=jnp.float32)
          + jnp.dot(c, w1c_ref[...], preferred_element_type=jnp.float32)
          + b1_ref[...])
    h1 = _elu(h1)

    # h2 = ELU(fc2(cat(x, h1)))
    h2 = (jnp.dot(x, w2x_ref[...], preferred_element_type=jnp.float32)
          + jnp.dot(h1, w2h_ref[...], preferred_element_type=jnp.float32)
          + b2_ref[...])
    h2 = _elu(h2)

    # heads on s = cat(x, h2)
    mu_pre = (jnp.dot(x, wmx_ref[...], preferred_element_type=jnp.float32)
              + jnp.dot(h2, wmh_ref[...], preferred_element_type=jnp.float32)
              + bm_ref[...])
    lv_pre = (jnp.dot(x, wlx_ref[...], preferred_element_type=jnp.float32)
              + jnp.dot(h2, wlh_ref[...], preferred_element_type=jnp.float32)
              + bl_ref[...])

    # label == '13' head. Exact identities (sigmoid(v) = (1 + tanh(v/2))/2):
    #   sigmoid(v)*8   - 4   == 4.0 * tanh(v/2)
    #   sigmoid(v)*6.6 - 6.4 == 3.3 * tanh(v/2) - 3.1
    mu = 4.0 * jnp.tanh(0.5 * mu_pre)
    logvar = 3.3 * jnp.tanh(0.5 * lv_pre) - 3.1

    # reparameterize: z = mu + eps * exp(0.5 * logvar)
    std = jnp.exp(0.5 * logvar)
    z = mu + eps_ref[...] * std

    z_ref[...] = z.astype(z_ref.dtype)
    mu_ref[...] = mu.astype(mu_ref.dtype)
    logvar_ref[...] = logvar.astype(logvar_ref.dtype)


@jax.jit
def encoder_ipm_forward(x, c, eps, params):
    """x: (B, ipm), c: (B, frame), eps: (B, latent). Returns (z, mu, logvar)."""
    B, ipm = x.shape
    frame = c.shape[1]
    latent = eps.shape[1]
    hidden = params["b1"].shape[1]

    # --- batch tiling: pad B so every block is full (no partial-tile masking). ---
    if B >= _MAX_BATCH_TILE:
        tb = _MAX_BATCH_TILE
    else:
        tb = max(8, ((B + 7) // 8) * 8)  # keep second-last block dim a multiple of 8
    b_pad = ((B + tb - 1) // tb) * tb
    if b_pad != B:
        pad = ((0, b_pad - B), (0, 0))
        x = jnp.pad(x, pad)
        c = jnp.pad(c, pad)
        eps = jnp.pad(eps, pad)

    grid = (b_pad // tb,)

    def row_spec(ncol):
        return pl.BlockSpec((tb, ncol), lambda i: (i, 0))

    def full_spec(a):
        # Weights/biases: full-array block, same index every step -> VMEM-resident.
        return pl.BlockSpec(a.shape, lambda i: (0, 0))

    w_args = (params["w1x"], params["w1c"], params["b1"],
              params["w2x"], params["w2h"], params["b2"],
              params["wmx"], params["wmh"], params["bm"],
              params["wlx"], params["wlh"], params["bl"])

    # Advisory cost estimate for XLA's scheduler.
    flops = 2 * b_pad * ((ipm + frame) * hidden + (ipm + hidden) * hidden
                         + 2 * (ipm + hidden) * latent)
    transcendentals = b_pad * (2 * hidden + 3 * latent)
    bytes_accessed = 4 * (b_pad * (ipm + frame + latent)      # inputs
                          + 3 * b_pad * latent                # outputs
                          + sum(int(a.size) for a in w_args)) # weights

    z, mu, logvar = pl.pallas_call(
        _encoder_ipm_kernel,
        grid=grid,
        in_specs=[row_spec(ipm), row_spec(frame), row_spec(latent)]
                 + [full_spec(a) for a in w_args],
        out_specs=(row_spec(latent), row_spec(latent), row_spec(latent)),
        out_shape=(jax.ShapeDtypeStruct((b_pad, latent), jnp.float32),
                   jax.ShapeDtypeStruct((b_pad, latent), jnp.float32),
                   jax.ShapeDtypeStruct((b_pad, latent), jnp.float32)),
        compiler_params=pltpu.CompilerParams(
            dimension_semantics=("parallel",)),
        cost_estimate=pl.CostEstimate(flops=flops,
                                      transcendentals=transcendentals,
                                      bytes_accessed=bytes_accessed),
    )(x, c, eps, *w_args)

    return z[:B], mu[:B], logvar[:B]


def init_params(key, ipm_size, frame_size, latent_size, hidden_size):
    """PyTorch-Linear-like uniform init. Weights stored as (in_dim, out_dim),
    pre-split at the concat boundary so the kernel avoids in-VMEM concatenation."""
    def linear(k, fan_in, fan_out):
        kw, kb = jax.random.split(k)
        bound = 1.0 / (fan_in ** 0.5)
        w = jax.random.uniform(kw, (fan_in, fan_out), jnp.float32, -bound, bound)
        b = jax.random.uniform(kb, (1, fan_out), jnp.float32, -bound, bound)
        return w, b

    key, k1, k2, k3, k4 = jax.random.split(key, 5)
    w1, b1 = linear(k1, ipm_size + frame_size, hidden_size)   # fc1
    w2, b2 = linear(k2, ipm_size + hidden_size, hidden_size)  # fc2
    wm, bm = linear(k3, ipm_size + hidden_size, latent_size)  # mu head
    wl, bl = linear(k4, ipm_size + hidden_size, latent_size)  # logvar head

    return {
        "w1x": w1[:ipm_size], "w1c": w1[ipm_size:], "b1": b1,
        "w2x": w2[:ipm_size], "w2h": w2[ipm_size:], "b2": b2,
        "wmx": wm[:ipm_size], "wmh": wm[ipm_size:], "bm": bm,
        "wlx": wl[:ipm_size], "wlh": wl[ipm_size:], "bl": bl,
    }


def encoder_ipm_reference(x, c, eps, params):
    """Pure-JAX reference mirroring the PyTorch module (label == '13')."""
    w1 = jnp.concatenate([params["w1x"], params["w1c"]], axis=0)
    w2 = jnp.concatenate([params["w2x"], params["w2h"]], axis=0)
    wm = jnp.concatenate([params["wmx"], params["wmh"]], axis=0)
    wl = jnp.concatenate([params["wlx"], params["wlh"]], axis=0)

    def elu(v):
        return jnp.where(v > 0, v, jnp.exp(v) - 1.0)

    h1 = elu(jnp.concatenate([x, c], axis=1) @ w1 + params["b1"])
    h2 = elu(jnp.concatenate([x, h1], axis=1) @ w2 + params["b2"])
    s = jnp.concatenate([x, h2], axis=1)
    mu = jax.nn.sigmoid(s @ wm + params["bm"]) * 8.0 - 4.0
    logvar = jax.nn.sigmoid(s @ wl + params["bl"]) * 6.6 - 6.4
    std = jnp.exp(0.5 * logvar)
    z = mu + eps * std
    return z, mu, logvar


if __name__ == "__main__":
    key = jax.random.PRNGKey(0)

    # Small shapes consistent with the module's forward.
    batch, ipm_size, frame_size, hidden_size, latent_size = 16, 16, 16, 32, 8

    key, kx, kc, keps = jax.random.split(key, 4)
    x = jax.random.normal(kx, (batch, ipm_size), jnp.float32)
    c = jax.random.normal(kc, (batch, frame_size), jnp.float32)
    # torch.randn_like(std) equivalent: N(0,1) noise generated outside the kernel.
    eps = jax.random.normal(keps, (batch, latent_size), jnp.float32)

    params = init_params(key, ipm_size, frame_size, latent_size, hidden_size)

    z, mu, logvar = encoder_ipm_forward(x, c, eps, params)
    jax.block_until_ready((z, mu, logvar))

    z_ref, mu_ref, lv_ref = encoder_ipm_reference(x, c, eps, params)

    assert z.shape == (batch, latent_size), z.shape
    assert mu.shape == (batch, latent_size) and logvar.shape == (batch, latent_size)
    assert jnp.allclose(mu, mu_ref, atol=1e-5, rtol=1e-5), \
        float(jnp.max(jnp.abs(mu - mu_ref)))
    assert jnp.allclose(logvar, lv_ref, atol=1e-5, rtol=1e-5), \
        float(jnp.max(jnp.abs(logvar - lv_ref)))
    assert jnp.allclose(z, z_ref, atol=1e-5, rtol=1e-5), \
        float(jnp.max(jnp.abs(z - z_ref)))
    # Range checks implied by the '13' head.
    assert bool(jnp.all(mu > -4.0)) and bool(jnp.all(mu < 4.0))
    assert bool(jnp.all(logvar > -6.4)) and bool(jnp.all(logvar < 0.2))

    print("KERNEL_OK")
</pallas_src>

<mosaic_0001>
module attributes {stable_mosaic.version = 11 : i64} {
  func.func @_encoder_ipm_kernel(%arg0: i32, %arg1: memref<16x16xf32, #tpu.memory_space<vmem>>, %arg2: memref<16x16xf32, #tpu.memory_space<vmem>>, %arg3: memref<16x8xf32, #tpu.memory_space<vmem>>, %arg4: memref<16x32xf32, #tpu.memory_space<vmem>>, %arg5: memref<16x32xf32, #tpu.memory_space<vmem>>, %arg6: memref<1x32xf32, #tpu.memory_space<vmem>>, %arg7: memref<16x32xf32, #tpu.memory_space<vmem>>, %arg8: memref<32x32xf32, #tpu.memory_space<vmem>>, %arg9: memref<1x32xf32, #tpu.memory_space<vmem>>, %arg10: memref<16x8xf32, #tpu.memory_space<vmem>>, %arg11: memref<32x8xf32, #tpu.memory_space<vmem>>, %arg12: memref<1x8xf32, #tpu.memory_space<vmem>>, %arg13: memref<16x8xf32, #tpu.memory_space<vmem>>, %arg14: memref<32x8xf32, #tpu.memory_space<vmem>>, %arg15: memref<1x8xf32, #tpu.memory_space<vmem>>, %arg16: memref<16x8xf32, #tpu.memory_space<vmem>>, %arg17: memref<16x8xf32, #tpu.memory_space<vmem>>, %arg18: memref<16x8xf32, #tpu.memory_space<vmem>>) attributes {dimension_semantics = [#tpu.dimension_semantics<parallel>], iteration_bounds = array<i64: 1>, scalar_prefetch = 0 : i64, scratch_operands = 0 : i64, tpu.core_type = #tpu.core_type<tc>, window_params = [{transform_indices = @transform_0, window_bounds = array<i64: 16, 16>}, {transform_indices = @transform_1, window_bounds = array<i64: 16, 16>}, {transform_indices = @transform_2, window_bounds = array<i64: 16, 8>}, {pipeline_mode = #tpu.pipeline_mode<synchronous>, transform_indices = @transform_3, window_bounds = array<i64: 16, 32>}, {pipeline_mode = #tpu.pipeline_mode<synchronous>, transform_indices = @transform_4, window_bounds = array<i64: 16, 32>}, {pipeline_mode = #tpu.pipeline_mode<synchronous>, transform_indices = @transform_5, window_bounds = array<i64: 1, 32>}, {pipeline_mode = #tpu.pipeline_mode<synchronous>, transform_indices = @transform_6, window_bounds = array<i64: 16, 32>}, {pipeline_mode = #tpu.pipeline_mode<synchronous>, transform_indices = @transform_7, window_bounds = array<i64: 32, 32>}, {pipeline_mode = #tpu.pipeline_mode<synchronous>, transform_indices = @transform_8, window_bounds = array<i64: 1, 32>}, {pipeline_mode = #tpu.pipeline_mode<synchronous>, transform_indices = @transform_9, window_bounds = array<i64: 16, 8>}, {pipeline_mode = #tpu.pipeline_mode<synchronous>, transform_indices = @transform_10, window_bounds = array<i64: 32, 8>}, {pipeline_mode = #tpu.pipeline_mode<synchronous>, transform_indices = @transform_11, window_bounds = array<i64: 1, 8>}, {pipeline_mode = #tpu.pipeline_mode<synchronous>, transform_indices = @transform_12, window_bounds = array<i64: 16, 8>}, {pipeline_mode = #tpu.pipeline_mode<synchronous>, transform_indices = @transform_13, window_bounds = array<i64: 32, 8>}, {pipeline_mode = #tpu.pipeline_mode<synchronous>, transform_indices = @transform_14, window_bounds = array<i64: 1, 8>}, {transform_indices = @transform_15, window_bounds = array<i64: 16, 8>}, {transform_indices = @transform_16, window_bounds = array<i64: 16, 8>}, {transform_indices = @transform_17, window_bounds = array<i64: 16, 8>}]} {
    %c0 = arith.constant 0 : index
    %c0_0 = arith.constant 0 : index
    %0 = vector.load %arg1[%c0, %c0_0] : memref<16x16xf32, #tpu.memory_space<vmem>>, vector<16x16xf32>
    %c0_1 = arith.constant 0 : index
    %c0_2 = arith.constant 0 : index
    %1 = vector.load %arg2[%c0_1, %c0_2] : memref<16x16xf32, #tpu.memory_space<vmem>>, vector<16x16xf32>
    %c0_3 = arith.constant 0 : index
    %c0_4 = arith.constant 0 : index
    %2 = vector.load %arg4[%c0_3, %c0_4] : memref<16x32xf32, #tpu.memory_space<vmem>>, vector<16x32xf32>
    %cst = arith.constant dense<0.000000e+00> : vector<16x32xf32>
    %3 = tpu.matmul %0, %2, %cst {dimension_numbers = #tpu.dot_dimension_numbers<[1], [0], [0], [1], [0, 0, 1, 1], [], []>} : vector<16x16xf32>, vector<16x32xf32>, vector<16x32xf32> -> vector<16x32xf32>
    %c0_5 = arith.constant 0 : index
    %c0_6 = arith.constant 0 : index
    %4 = vector.load %arg5[%c0_5, %c0_6] : memref<16x32xf32, #tpu.memory_space<vmem>>, vector<16x32xf32>
    %cst_7 = arith.constant dense<0.000000e+00> : vector<16x32xf32>
    %5 = tpu.matmul %1, %4, %cst_7 {dimension_numbers = #tpu.dot_dimension_numbers<[1], [0], [0], [1], [0, 0, 1, 1], [], []>} : vector<16x16xf32>, vector<16x32xf32>, vector<16x32xf32> -> vector<16x32xf32>
    %6 = arith.addf %3, %5 : vector<16x32xf32>
    %c0_8 = arith.constant 0 : index
    %c0_9 = arith.constant 0 : index
    %7 = vector.load %arg6[%c0_8, %c0_9] : memref<1x32xf32, #tpu.memory_space<vmem>>, vector<1x32xf32>
    %8 = vector.broadcast %7 : vector<1x32xf32> to vector<16x32xf32>
    %9 = arith.addf %6, %8 : vector<16x32xf32>
    %cst_10 = arith.constant 0.000000e+00 : f32
    %10 = vector.broadcast %cst_10 : f32 to vector<16x32xf32>
    %11 = arith.cmpf ogt, %9, %10 : vector<16x32xf32>
    %12 = math.exp %9 : vector<16x32xf32>
    %cst_11 = arith.constant 1.000000e+00 : f32
    %13 = vector.broadcast %cst_11 : f32 to vector<16x32xf32>
    %14 = arith.subf %12, %13 : vector<16x32xf32>
    %15 = arith.select %11, %9, %14 : vector<16x32xi1>, vector<16x32xf32>
    %c0_12 = arith.constant 0 : index
    %c0_13 = arith.constant 0 : index
    %16 = vector.load %arg7[%c0_12, %c0_13] : memref<16x32xf32, #tpu.memory_space<vmem>>, vector<16x32xf32>
    %cst_14 = arith.constant dense<0.000000e+00> : vector<16x32xf32>
    %17 = tpu.matmul %0, %16, %cst_14 {dimension_numbers = #tpu.dot_dimension_numbers<[1], [0], [0], [1], [0, 0, 1, 1], [], []>} : vector<16x16xf32>, vector<16x32xf32>, vector<16x32xf32> -> vector<16x32xf32>
    %c0_15 = arith.constant 0 : index
    %c0_16 = arith.constant 0 : index
    %18 = vector.load %arg8[%c0_15, %c0_16] : memref<32x32xf32, #tpu.memory_space<vmem>>, vector<32x32xf32>
    %cst_17 = arith.constant dense<0.000000e+00> : vector<16x32xf32>
    %19 = tpu.matmul %15, %18, %cst_17 {dimension_numbers = #tpu.dot_dimension_numbers<[1], [0], [0], [1], [0, 0, 1, 1], [], []>} : vector<16x32xf32>, vector<32x32xf32>, vector<16x32xf32> -> vector<16x32xf32>
    %20 = arith.addf %17, %19 : vector<16x32xf32>
    %c0_18 = arith.constant 0 : index
    %c0_19 = arith.constant 0 : index
    %21 = vector.load %arg9[%c0_18, %c0_19] : memref<1x32xf32, #tpu.memory_space<vmem>>, vector<1x32xf32>
    %22 = vector.broadcast %21 : vector<1x32xf32> to vector<16x32xf32>
    %23 = arith.addf %20, %22 : vector<16x32xf32>
    %cst_20 = arith.constant 0.000000e+00 : f32
    %24 = vector.broadcast %cst_20 : f32 to vector<16x32xf32>
    %25 = arith.cmpf ogt, %23, %24 : vector<16x32xf32>
    %26 = math.exp %23 : vector<16x32xf32>
    %cst_21 = arith.constant 1.000000e+00 : f32
    %27 = vector.broadcast %cst_21 : f32 to vector<16x32xf32>
    %28 = arith.subf %26, %27 : vector<16x32xf32>
    %29 = arith.select %25, %23, %28 : vector<16x32xi1>, vector<16x32xf32>
    %c0_22 = arith.constant 0 : index
    %c0_23 = arith.constant 0 : index
    %30 = vector.load %arg10[%c0_22, %c0_23] : memref<16x8xf32, #tpu.memory_space<vmem>>, vector<16x8xf32>
    %cst_24 = arith.constant dense<0.000000e+00> : vector<16x8xf32>
    %31 = tpu.matmul %0, %30, %cst_24 {dimension_numbers = #tpu.dot_dimension_numbers<[1], [0], [0], [1], [0, 0, 1, 1], [], []>} : vector<16x16xf32>, vector<16x8xf32>, vector<16x8xf32> -> vector<16x8xf32>
    %c0_25 = arith.constant 0 : index
    %c0_26 = arith.constant 0 : index
    %32 = vector.load %arg11[%c0_25, %c0_26] : memref<32x8xf32, #tpu.memory_space<vmem>>, vector<32x8xf32>
    %cst_27 = arith.constant dense<0.000000e+00> : vector<16x8xf32>
    %33 = tpu.matmul %29, %32, %cst_27 {dimension_numbers = #tpu.dot_dimension_numbers<[1], [0], [0], [1], [0, 0, 1, 1], [], []>} : vector<16x32xf32>, vector<32x8xf32>, vector<16x8xf32> -> vector<16x8xf32>
    %34 = arith.addf %31, %33 : vector<16x8xf32>
    %c0_28 = arith.constant 0 : index
    %c0_29 = arith.constant 0 : index
    %35 = vector.load %arg12[%c0_28, %c0_29] : memref<1x8xf32, #tpu.memory_space<vmem>>, vector<1x8xf32>
    %36 = vector.broadcast %35 : vector<1x8xf32> to vector<16x8xf32>
    %37 = arith.addf %34, %36 : vector<16x8xf32>
    %c0_30 = arith.constant 0 : index
    %c0_31 = arith.constant 0 : index
    %38 = vector.load %arg13[%c0_30, %c0_31] : memref<16x8xf32, #tpu.memory_space<vmem>>, vector<16x8xf32>
    %cst_32 = arith.constant dense<0.000000e+00> : vector<16x8xf32>
    %39 = tpu.matmul %0, %38, %cst_32 {dimension_numbers = #tpu.dot_dimension_numbers<[1], [0], [0], [1], [0, 0, 1, 1], [], []>} : vector<16x16xf32>, vector<16x8xf32>, vector<16x8xf32> -> vector<16x8xf32>
    %c0_33 = arith.constant 0 : index
    %c0_34 = arith.constant 0 : index
    %40 = vector.load %arg14[%c0_33, %c0_34] : memref<32x8xf32, #tpu.memory_space<vmem>>, vector<32x8xf32>
    %cst_35 = arith.constant dense<0.000000e+00> : vector<16x8xf32>
    %41 = tpu.matmul %29, %40, %cst_35 {dimension_numbers = #tpu.dot_dimension_numbers<[1], [0], [0], [1], [0, 0, 1, 1], [], []>} : vector<16x32xf32>, vector<32x8xf32>, vector<16x8xf32> -> vector<16x8xf32>
    %42 = arith.addf %39, %41 : vector<16x8xf32>
    %c0_36 = arith.constant 0 : index
    %c0_37 = arith.constant 0 : index
    %43 = vector.load %arg15[%c0_36, %c0_37] : memref<1x8xf32, #tpu.memory_space<vmem>>, vector<1x8xf32>
    %44 = vector.broadcast %43 : vector<1x8xf32> to vector<16x8xf32>
    %45 = arith.addf %42, %44 : vector<16x8xf32>
    %cst_38 = arith.constant 5.000000e-01 : f32
    %46 = vector.broadcast %cst_38 : f32 to vector<16x8xf32>
    %47 = arith.mulf %46, %37 : vector<16x8xf32>
    %48 = math.tanh %47 : vector<16x8xf32>
    %cst_39 = arith.constant 4.000000e+00 : f32
    %49 = vector.broadcast %cst_39 : f32 to vector<16x8xf32>
    %50 = arith.mulf %49, %48 : vector<16x8xf32>
    %cst_40 = arith.constant 5.000000e-01 : f32
    %51 = vector.broadcast %cst_40 : f32 to vector<16x8xf32>
    %52 = arith.mulf %51, %45 : vector<16x8xf32>
    %53 = math.tanh %52 : vector<16x8xf32>
    %cst_41 = arith.constant 3.300000e+00 : f32
    %54 = vector.broadcast %cst_41 : f32 to vector<16x8xf32>
    %55 = arith.mulf %54, %53 : vector<16x8xf32>
    %cst_42 = arith.constant 3.100000e+00 : f32
    %56 = vector.broadcast %cst_42 : f32 to vector<16x8xf32>
    %57 = arith.subf %55, %56 : vector<16x8xf32>
    %cst_43 = arith.constant 5.000000e-01 : f32
    %58 = vector.broadcast %cst_43 : f32 to vector<16x8xf32>
    %59 = arith.mulf %58, %57 : vector<16x8xf32>
    %60 = math.exp %59 : vector<16x8xf32>
    %c0_44 = arith.constant 0 : index
    %c0_45 = arith.constant 0 : index
    %61 = vector.load %arg3[%c0_44, %c0_45] : memref<16x8xf32, #tpu.memory_space<vmem>>, vector<16x8xf32>
    %62 = arith.mulf %61, %60 : vector<16x8xf32>
    %63 = arith.addf %50, %62 : vector<16x8xf32>
    %c0_46 = arith.constant 0 : index
    %c0_47 = arith.constant 0 : index
    %64 = vector.load %arg16[%c0_46, %c0_47] : memref<16x8xf32, #tpu.memory_space<vmem>>, vector<16x8xf32>
    tpu.vector_store %arg16[%c0_46, %c0_47], %63 {strides = array<i32>} : memref<16x8xf32, #tpu.memory_space<vmem>>, vector<16x8xf32>,
    %c0_48 = arith.constant 0 : index
    %c0_49 = arith.constant 0 : index
    %65 = vector.load %arg17[%c0_48, %c0_49] : memref<16x8xf32, #tpu.memory_space<vmem>>, vector<16x8xf32>
    tpu.vector_store %arg17[%c0_48, %c0_49], %50 {strides = array<i32>} : memref<16x8xf32, #tpu.memory_space<vmem>>, vector<16x8xf32>,
    %c0_50 = arith.constant 0 : index
    %c0_51 = arith.constant 0 : index
    %66 = vector.load %arg18[%c0_50, %c0_51] : memref<16x8xf32, #tpu.memory_space<vmem>>, vector<16x8xf32>
    tpu.vector_store %arg18[%c0_50, %c0_51], %57 {strides = array<i32>} : memref<16x8xf32, #tpu.memory_space<vmem>>, vector<16x8xf32>,
    return
  }
  func.func @transform_0(%arg0: i32) -> (i32, i32) {
    %c0_i32 = arith.constant 0 : i32
    %c0_i32_0 = arith.constant 0 : i32
    return %arg0, %c0_i32 : i32, i32
  }
  func.func @transform_1(%arg0: i32) -> (i32, i32) {
    %c0_i32 = arith.constant 0 : i32
    %c0_i32_0 = arith.constant 0 : i32
    return %arg0, %c0_i32 : i32, i32
  }
  func.func @transform_2(%arg0: i32) -> (i32, i32) {
    %c0_i32 = arith.constant 0 : i32
    %c0_i32_0 = arith.constant 0 : i32
    return %arg0, %c0_i32 : i32, i32
  }
  func.func @transform_3(%arg0: i32) -> (i32, i32) {
    %c0_i32 = arith.constant 0 : i32
    %c0_i32_0 = arith.constant 0 : i32
    %c0_i32_1 = arith.constant 0 : i32
    return %c0_i32, %c0_i32_0 : i32, i32
  }
  func.func @transform_4(%arg0: i32) -> (i32, i32) {
    %c0_i32 = arith.constant 0 : i32
    %c0_i32_0 = arith.constant 0 : i32
    %c0_i32_1 = arith.constant 0 : i32
    return %c0_i32, %c0_i32_0 : i32, i32
  }
  func.func @transform_5(%arg0: i32) -> (i32, i32) {
    %c0_i32 = arith.constant 0 : i32
    %c0_i32_0 = arith.constant 0 : i32
    %c0_i32_1 = arith.constant 0 : i32
    return %c0_i32, %c0_i32_0 : i32, i32
  }
  func.func @transform_6(%arg0: i32) -> (i32, i32) {
    %c0_i32 = arith.constant 0 : i32
    %c0_i32_0 = arith.constant 0 : i32
    %c0_i32_1 = arith.constant 0 : i32
    return %c0_i32, %c0_i32_0 : i32, i32
  }
  func.func @transform_7(%arg0: i32) -> (i32, i32) {
    %c0_i32 = arith.constant 0 : i32
    %c0_i32_0 = arith.constant 0 : i32
    %c0_i32_1 = arith.constant 0 : i32
    return %c0_i32, %c0_i32_0 : i32, i32
  }
  func.func @transform_8(%arg0: i32) -> (i32, i32) {
    %c0_i32 = arith.constant 0 : i32
    %c0_i32_0 = arith.constant 0 : i32
    %c0_i32_1 = arith.constant 0 : i32
    return %c0_i32, %c0_i32_0 : i32, i32
  }
  func.func @transform_9(%arg0: i32) -> (i32, i32) {
    %c0_i32 = arith.constant 0 : i32
    %c0_i32_0 = arith.constant 0 : i32
    %c0_i32_1 = arith.constant 0 : i32
    return %c0_i32, %c0_i32_0 : i32, i32
  }
  func.func @transform_10(%arg0: i32) -> (i32, i32) {
    %c0_i32 = arith.constant 0 : i32
    %c0_i32_0 = arith.constant 0 : i32
    %c0_i32_1 = arith.constant 0 : i32
    return %c0_i32, %c0_i32_0 : i32, i32
  }
  func.func @transform_11(%arg0: i32) -> (i32, i32) {
    %c0_i32 = arith.constant 0 : i32
    %c0_i32_0 = arith.constant 0 : i32
    %c0_i32_1 = arith.constant 0 : i32
    return %c0_i32, %c0_i32_0 : i32, i32
  }
  func.func @transform_12(%arg0: i32) -> (i32, i32) {
    %c0_i32 = arith.constant 0 : i32
    %c0_i32_0 = arith.constant 0 : i32
    %c0_i32_1 = arith.constant 0 : i32
    return %c0_i32, %c0_i32_0 : i32, i32
  }
  func.func @transform_13(%arg0: i32) -> (i32, i32) {
    %c0_i32 = arith.constant 0 : i32
    %c0_i32_0 = arith.constant 0 : i32
    %c0_i32_1 = arith.constant 0 : i32
    return %c0_i32, %c0_i32_0 : i32, i32
  }
  func.func @transform_14(%arg0: i32) -> (i32, i32) {
    %c0_i32 = arith.constant 0 : i32
    %c0_i32_0 = arith.constant 0 : i32
    %c0_i32_1 = arith.constant 0 : i32
    return %c0_i32, %c0_i32_0 : i32, i32
  }
  func.func @transform_15(%arg0: i32) -> (i32, i32) {
    %c0_i32 = arith.constant 0 : i32
    %c0_i32_0 = arith.constant 0 : i32
    return %arg0, %c0_i32 : i32, i32
  }
  func.func @transform_16(%arg0: i32) -> (i32, i32) {
    %c0_i32 = arith.constant 0 : i32
    %c0_i32_0 = arith.constant 0 : i32
    return %arg0, %c0_i32 : i32, i32
  }
  func.func @transform_17(%arg0: i32) -> (i32, i32) {
    %c0_i32 = arith.constant 0 : i32
    %c0_i32_0 = arith.constant 0 : i32
    return %arg0, %c0_i32 : i32, i32
  }
}

</mosaic_0001>

<llo_original>
// kernel: encoder_ipm_forward.1
$region0: #{encoder_ipm_forward.1}
  #allocation0 [shape = 'u32[]', space=smem, size = 0x4, offset = 0x4, fixed_abs, tag = 'smem constant byte address 0x4 - core index']
  #allocation1 [shape = 'u32[144,128]{1,0:T(1,128)}', space=vmem, size = 0x12000, scoped, tag = 'internal scratch']
  %s0 = inlined_call_operand.vmem [shape: f32[16,16], index: 0, kind: input, shape index: {}]
  %s1 = inlined_call_operand.vmem [shape: f32[16,16], index: 1, kind: input, shape index: {}]
  %s2 = inlined_call_operand.vmem [shape: f32[16,8], index: 2, kind: input, shape index: {}]
  %s3 = inlined_call_operand.vmem [shape: f32[16,32], index: 3, kind: input, shape index: {}]
  %s4 = inlined_call_operand.vmem [shape: f32[16,32], index: 4, kind: input, shape index: {}]
  %s5 = inlined_call_operand.vmem [shape: f32[1,32], index: 5, kind: input, shape index: {}]
  %s6 = inlined_call_operand.vmem [shape: f32[16,32], index: 6, kind: input, shape index: {}]
  %s7 = inlined_call_operand.vmem [shape: f32[32,32], index: 7, kind: input, shape index: {}]
  %s8 = inlined_call_operand.vmem [shape: f32[1,32], index: 8, kind: input, shape index: {}]
  %s9 = inlined_call_operand.vmem [shape: f32[16,8], index: 9, kind: input, shape index: {}]
  %s10 = inlined_call_operand.vmem [shape: f32[32,8], index: 10, kind: input, shape index: {}]
  %s11 = inlined_call_operand.vmem [shape: f32[1,8], index: 11, kind: input, shape index: {}]
  %s12 = inlined_call_operand.vmem [shape: f32[16,8], index: 12, kind: input, shape index: {}]
  %s13 = inlined_call_operand.vmem [shape: f32[32,8], index: 13, kind: input, shape index: {}]
  %s14 = inlined_call_operand.vmem [shape: f32[1,8], index: 14, kind: input, shape index: {}]
  %s15 = inlined_call_operand.vmem [shape: f32[16,8], index: 15, kind: output, shape index: {0}]
  %s16 = inlined_call_operand.vmem [shape: f32[16,8], index: 16, kind: output, shape index: {1}]
  %s17 = inlined_call_operand.vmem [shape: f32[16,8], index: 17, kind: output, shape index: {2}]
  %18 = xla_tuple %s15, %s16, %s17
  %s19 = sld [smem:[#allocation0]]
  $region86: #{encoder_ipm_forward.1} parent=0
    _
  %s21 = ssub.s32 1, %s19
  %s22 = scalar_select 0, %s21, %s19
  // Predicated region
  $region2: #{encoder_ipm_forward.1} parent=0 // pred_check
    _
  $region3: #{encoder_ipm_forward.1} parent=0 // pred_check_branch
    %24 = sbr.rel (0) target = $region5
  $region4: #{encoder_ipm_forward.1} parent=0 // pred_region
    _
  $region5: #{encoder_ipm_forward.1} parent=0 // pred_fallthru
    _
  // Predicated region
  $region6: #{encoder_ipm_forward.1} parent=0 // pred_check
    _
  $region7: #{encoder_ipm_forward.1} parent=0 // pred_check_branch
    %26 = sbr.rel (0) target = $region9
  $region8: #{encoder_ipm_forward.1} parent=0 // pred_region
    _
  $region9: #{encoder_ipm_forward.1} parent=0 // pred_fallthru
    _
  // Predicated region
  $region10: #{encoder_ipm_forward.1} parent=0 // pred_check
    _
  $region11: #{encoder_ipm_forward.1} parent=0 // pred_check_branch
    %28 = sbr.rel (0) target = $region13
  $region12: #{encoder_ipm_forward.1} parent=0 // pred_region
    _
  $region13: #{encoder_ipm_forward.1} parent=0 // pred_fallthru
    _
  // Predicated region
  $region14: #{encoder_ipm_forward.1} parent=0 // pred_check
    _
  $region15: #{encoder_ipm_forward.1} parent=0 // pred_check_branch
    %30 = sbr.rel (0) target = $region17
  $region16: #{encoder_ipm_forward.1} parent=0 // pred_region
    _
  $region17: #{encoder_ipm_forward.1} parent=0 // pred_fallthru
    _
  // Predicated region
  $region18: #{encoder_ipm_forward.1} parent=0 // pred_check
    _
  $region19: #{encoder_ipm_forward.1} parent=0 // pred_check_branch
    %32 = sbr.rel (0) target = $region21
  $region20: #{encoder_ipm_forward.1} parent=0 // pred_region
    _
  $region21: #{encoder_ipm_forward.1} parent=0 // pred_fallthru
    _
  // Predicated region
  $region22: #{encoder_ipm_forward.1} parent=0 // pred_check
    _
  $region23: #{encoder_ipm_forward.1} parent=0 // pred_check_branch
    %34 = sbr.rel (0) target = $region25
  $region24: #{encoder_ipm_forward.1} parent=0 // pred_region
    _
  $region25: #{encoder_ipm_forward.1} parent=0 // pred_fallthru
    _
  // Predicated region
  $region26: #{encoder_ipm_forward.1} parent=0 // pred_check
    _
  $region27: #{encoder_ipm_forward.1} parent=0 // pred_check_branch
    %36 = sbr.rel (0) target = $region29
  $region28: #{encoder_ipm_forward.1} parent=0 // pred_region
    _
  $region29: #{encoder_ipm_forward.1} parent=0 // pred_fallthru
    _
  // Predicated region
  $region30: #{encoder_ipm_forward.1} parent=0 // pred_check
    _
  $region31: #{encoder_ipm_forward.1} parent=0 // pred_check_branch
    %38 = sbr.rel (0) target = $region33
  $region32: #{encoder_ipm_forward.1} parent=0 // pred_region
    _
  $region33: #{encoder_ipm_forward.1} parent=0 // pred_fallthru
    _
  // Predicated region
  $region34: #{encoder_ipm_forward.1} parent=0 // pred_check
    _
  $region35: #{encoder_ipm_forward.1} parent=0 // pred_check_branch
    %40 = sbr.rel (0) target = $region37
  $region36: #{encoder_ipm_forward.1} parent=0 // pred_region
    _
  $region37: #{encoder_ipm_forward.1} parent=0 // pred_fallthru
    _
  // Predicated region
  $region38: #{encoder_ipm_forward.1} parent=0 // pred_check
    _
  $region39: #{encoder_ipm_forward.1} parent=0 // pred_check_branch
    %42 = sbr.rel (0) target = $region41
  $region40: #{encoder_ipm_forward.1} parent=0 // pred_region
    _
  $region41: #{encoder_ipm_forward.1} parent=0 // pred_fallthru
    _
  // Predicated region
  $region42: #{encoder_ipm_forward.1} parent=0 // pred_check
    _
  $region43: #{encoder_ipm_forward.1} parent=0 // pred_check_branch
    %44 = sbr.rel (0) target = $region45
  $region44: #{encoder_ipm_forward.1} parent=0 // pred_region
    _
  $region45: #{encoder_ipm_forward.1} parent=0 // pred_fallthru
    _
  // Predicated region
  $region46: #{encoder_ipm_forward.1} parent=0 // pred_check
    _
  $region47: #{encoder_ipm_forward.1} parent=0 // pred_check_branch
    %46 = sbr.rel (0) target = $region49
  $region48: #{encoder_ipm_forward.1} parent=0 // pred_region
    _
  $region49: #{encoder_ipm_forward.1} parent=0 // pred_fallthru
    _
  // Predicated region
  $region50: #{encoder_ipm_forward.1} parent=0 // pred_check
    _
  $region51: #{encoder_ipm_forward.1} parent=0 // pred_check_branch
    %48 = sbr.rel (0) target = $region53
  $region52: #{encoder_ipm_forward.1} parent=0 // pred_region
    _
  $region53: #{encoder_ipm_forward.1} parent=0 // pred_fallthru
    _
  // Predicated region
  $region54: #{encoder_ipm_forward.1} parent=0 // pred_check
    _
  $region55: #{encoder_ipm_forward.1} parent=0 // pred_check_branch
    %50 = sbr.rel (0) target = $region57
  $region56: #{encoder_ipm_forward.1} parent=0 // pred_region
    _
  $region57: #{encoder_ipm_forward.1} parent=0 // pred_fallthru
    _
  // Predicated region
  $region58: #{encoder_ipm_forward.1} parent=0 // pred_check
    _
  $region59: #{encoder_ipm_forward.1} parent=0 // pred_check_branch
    %52 = sbr.rel (0) target = $region61
  $region60: #{encoder_ipm_forward.1} parent=0 // pred_region
    _
  $region61: #{encoder_ipm_forward.1} parent=0 // pred_fallthru
    _
  %v53 = vld [vmem:[%s0] sm:$0xff]
  %v54 = vld [vmem:[%s0 + $0x8] sm:$0xff]
  %v55 = vld [vmem:[%s1] sm:$0xff]
  %v56 = vld [vmem:[%s1 + $0x8] sm:$0xff]
  %v57 = vld [vmem:[%s3] sm:$0xff]
  %v58 = vld [vmem:[%s3 + $0x8] sm:$0xff]
  %v59 = vld [vmem:[%s4] sm:$0xff]
  %v60 = vld [vmem:[%s4 + $0x8] sm:$0xff]
  %vm61 = vcmask 130048
  %v63 = vsel %vm61, %v55, 0
  %v66 = vsel %vm61, %v56, 0
  %68 = vmatprep.subr.mxu0 0.0
  %69 = vmatpush1.msra.mxu0 %v59
  %70 = vmatprep.subr.mxu0 0.0
  %71 = vmatpush1.msra.mxu0 %v60
  %72 = vmatprep.subr.mxu0 0.0
  %73 = vmatpush1.msra.mxu0 0.0
  %74 = vmatprep.subr.mxu0 0.0
  %75 = vmatpush1.msra.mxu0 0.0
  %76 = vmatprep.subr.mxu0 0.0
  %77 = vmatpush1.msra.mxu0 0.0
  %78 = vmatprep.subr.mxu0 0.0
  %79 = vmatpush1.msra.mxu0 0.0
  %80 = vmatprep.subr.mxu0 0.0
  %81 = vmatpush1.msra.mxu0 0.0
  %82 = vmatprep.subr.mxu0 0.0
  %83 = vmatpush1.msra.mxu0 0.0
  %84 = vmatprep.subr.mxu0 0.0
  %85 = vmatpush1.msra.mxu0 0.0
  %86 = vmatprep.subr.mxu0 0.0
  %87 = vmatpush1.msra.mxu0 0.0
  %88 = vmatprep.subr.mxu0 0.0
  %89 = vmatpush1.msra.mxu0 0.0
  %90 = vmatprep.subr.mxu0 0.0
  %91 = vmatpush1.msra.mxu0 0.0
  %92 = vmatprep.subr.mxu0 0.0
  %93 = vmatpush1.msra.mxu0 0.0
  %94 = vmatprep.subr.mxu0 0.0
  %95 = vmatpush1.msra.mxu0 0.0
  %96 = vmatprep.subr.mxu0 0.0
  %97 = vmatpush1.msra.mxu0 0.0
  %98 = vmatprep.subr.mxu0 0.0
  %99 = vmatpush1.msra.mxu0 0.0
  %100 = vmatprep.subr.mxu0 0.0
  %101 = vmatpush1.msra.mxu0 0.0
  %102 = vmatprep.subr.mxu0 0.0
  %103 = vmatpush1.msra.mxu0 0.0
  %104 = vmatprep.subr.mxu0 0.0
  %105 = vmatpush1.msra.mxu0 0.0
  %106 = vmatprep.subr.mxu0 0.0
  %107 = vmatpush1.msra.mxu0 0.0
  %108 = vmatprep.subr.mxu0 0.0
  %109 = vmatpush1.msra.mxu0 0.0
  %110 = vmatprep.subr.mxu0 0.0
  %111 = vmatpush1.msra.mxu0 0.0
  %112 = vmatprep.subr.mxu0 0.0
  %113 = vmatpush1.msra.mxu0 0.0
  %114 = vmatprep.subr.mxu0 0.0
  %115 = vmatpush1.msra.mxu0 0.0
  %116 = vmatprep.subr.mxu0 0.0
  %117 = vmatpush1.msra.mxu0 0.0
  %118 = vmatprep.subr.mxu0 0.0
  %119 = vmatpush1.msra.mxu0 0.0
  %120 = vmatprep.subr.mxu0 0.0
  %121 = vmatpush1.msra.mxu0 0.0
  %122 = vmatprep.subr.mxu0 0.0
  %123 = vmatpush1.msra.mxu0 0.0
  %124 = vmatprep.subr.mxu0 0.0
  %125 = vmatpush1.msra.mxu0 0.0
  %126 = vmatprep.subr.mxu0 0.0
  %127 = vmatpush1.msra.mxu0 0.0
  %128 = vmatprep.subr.mxu0 0.0
  %129 = vmatpush1.msra.mxu0 0.0
  %130 = vmatprep.subr.mxu0 0.0
  %131 = vmatpush1.msra.mxu0 0.0
  %132 = vmatprep.mubr.f32.mxu0 0.0
  %133 = vmatmul.mubr.f32.gmra.mrb[0].mxu0 %v63
  %v134 = vpop.f32.mrb[0].mxu0
  %v135 = vadd.f32 0.0, %v134
  %v136 = vpop.f32.mrb[0].mxu0
  %137 = vmatprep.mubr.f32.mxu0 0.0
  %138 = vmatmul.mubr.f32.gmra.mrb[0].mxu0 %v66
  %v139 = vpop.f32.mrb[0].mxu0
  %v140 = vadd.f32 0.0, %v139
  %v141 = vpop.f32.mrb[0].mxu0
  %142 = vdwg.mxu0
  %v144 = vsel %vm61, %v53, 0
  %v147 = vsel %vm61, %v54, 0
  %149 = vmatprep.subr.mxu0 0.0
  %150 = vmatpush1.msra.mxu0 %v57
  %151 = vmatprep.subr.mxu0 0.0
  %152 = vmatpush1.msra.mxu0 %v58
  %153 = vmatprep.subr.mxu0 0.0
  %154 = vmatpush1.msra.mxu0 0.0
  %155 = vmatprep.subr.mxu0 0.0
  %156 = vmatpush1.msra.mxu0 0.0
  %157 = vmatprep.subr.mxu0 0.0
  %158 = vmatpush1.msra.mxu0 0.0
  %159 = vmatprep.subr.mxu0 0.0
  %160 = vmatpush1.msra.mxu0 0.0
  %161 = vmatprep.subr.mxu0 0.0
  %162 = vmatpush1.msra.mxu0 0.0
  %163 = vmatprep.subr.mxu0 0.0
  %164 = vmatpush1.msra.mxu0 0.0
  %165 = vmatprep.subr.mxu0 0.0
  %166 = vmatpush1.msra.mxu0 0.0
  %167 = vmatprep.subr.mxu0 0.0
  %168 = vmatpush1.msra.mxu0 0.0
  %169 = vmatprep.subr.mxu0 0.0
  %170 = vmatpush1.msra.mxu0 0.0
  %171 = vmatprep.subr.mxu0 0.0
  %172 = vmatpush1.msra.mxu0 0.0
  %173 = vmatprep.subr.mxu0 0.0
  %174 = vmatpush1.msra.mxu0 0.0
  %175 = vmatprep.subr.mxu0 0.0
  %176 = vmatpush1.msra.mxu0 0.0
  %177 = vmatprep.subr.mxu0 0.0
  %178 = vmatpush1.msra.mxu0 0.0
  %179 = vmatprep.subr.mxu0 0.0
  %180 = vmatpush1.msra.mxu0 0.0
  %181 = vmatprep.subr.mxu0 0.0
  %182 = vmatpush1.msra.mxu0 0.0
  %183 = vmatprep.subr.mxu0 0.0
  %184 = vmatpush1.msra.mxu0 0.0
  %185 = vmatprep.subr.mxu0 0.0
  %186 = vmatpush1.msra.mxu0 0.0
  %187 = vmatprep.subr.mxu0 0.0
  %188 = vmatpush1.msra.mxu0 0.0
  %189 = vmatprep.subr.mxu0 0.0
  %190 = vmatpush1.msra.mxu0 0.0
  %191 = vmatprep.subr.mxu0 0.0
  %192 = vmatpush1.msra.mxu0 0.0
  %193 = vmatprep.subr.mxu0 0.0
  %194 = vmatpush1.msra.mxu0 0.0
  %195 = vmatprep.subr.mxu0 0.0
  %196 = vmatpush1.msra.mxu0 0.0
  %197 = vmatprep.subr.mxu0 0.0
  %198 = vmatpush1.msra.mxu0 0.0
  %199 = vmatprep.subr.mxu0 0.0
  %200 = vmatpush1.msra.mxu0 0.0
  %201 = vmatprep.subr.mxu0 0.0
  %202 = vmatpush1.msra.mxu0 0.0
  %203 = vmatprep.subr.mxu0 0.0
  %204 = vmatpush1.msra.mxu0 0.0
  %205 = vmatprep.subr.mxu0 0.0
  %206 = vmatpush1.msra.mxu0 0.0
  %207 = vmatprep.subr.mxu0 0.0
  %208 = vmatpush1.msra.mxu0 0.0
  %209 = vmatprep.subr.mxu0 0.0
  %210 = vmatpush1.msra.mxu0 0.0
  %211 = vmatprep.subr.mxu0 0.0
  %212 = vmatpush1.msra.mxu0 0.0
  %213 = vmatprep.mubr.f32.mxu0 0.0
  %214 = vmatmul.mubr.f32.gmra.mrb[0].mxu0 %v144
  %v215 = vpop.f32.mrb[0].mxu0
  %v216 = vadd.f32 %v135, %v215
  %v217 = vpop.f32.mrb[0].mxu0
  %218 = vmatprep.mubr.f32.mxu0 0.0
  %219 = vmatmul.mubr.f32.gmra.mrb[0].mxu0 %v147
  %v220 = vpop.f32.mrb[0].mxu0
  %v221 = vadd.f32 %v140, %v220
  %v222 = vpop.f32.mrb[0].mxu0
  %223 = vdwg.mxu0
  %v224 = vld [vmem:[%s5] sm:$0x1]
  %v226 = vlaneseq
  %v227 = vshrl.u32 %v226, 7
  %v228 = vsub.s32 0, %v227
  %v229 = vrot.slane %v224, %v228
  %v231 = vadd.f32 %v216, %v229
  %v232 = vadd.f32 %v221, %v229
  %vm233 = vcmp.gt.f32.partialorder %v231, 0.0
  %vm234 = vcmp.gt.f32.partialorder %v232, 0.0
  %v235 = vmul.f32 %v231, 1.442695
  %v236 = vpow.pop %v235
  %v237 = vmul.f32 %v232, 1.442695
  %v238 = vpow.pop %v237
  %v239 = vsub.f32 %v236, 1.0
  %v240 = vsub.f32 %v238, 1.0
  %v241 = vsel %vm233, %v231, %v239
  %v242 = vsel %vm234, %v232, %v240
  %v243 = vld [vmem:[%s6] sm:$0xff]
  %v244 = vld [vmem:[%s6 + $0x8] sm:$0xff]
  %v245 = vld [vmem:[%s7] sm:$0xff]
  %v246 = vld [vmem:[%s7 + $0x8] sm:$0xff]
  %v247 = vld [vmem:[%s7 + $0x10] sm:$0xff]
  %v248 = vld [vmem:[%s7 + $0x18] sm:$0xff]
  %vm249 = vcmask 261120
  %v251 = vsel %vm249, %v241, 0
  %v254 = vsel %vm249, %v242, 0
  %256 = vmatprep.subr.mxu0 0.0
  %257 = vmatpush1.msra.mxu0 %v245
  %258 = vmatprep.subr.mxu0 0.0
  %259 = vmatpush1.msra.mxu0 %v246
  %260 = vmatprep.subr.mxu0 0.0
  %261 = vmatpush1.msra.mxu0 %v247
  %262 = vmatprep.subr.mxu0 0.0
  %263 = vmatpush1.msra.mxu0 %v248
  %264 = vmatprep.subr.mxu0 0.0
  %265 = vmatpush1.msra.mxu0 0.0
  %266 = vmatprep.subr.mxu0 0.0
  %267 = vmatpush1.msra.mxu0 0.0
  %268 = vmatprep.subr.mxu0 0.0
  %269 = vmatpush1.msra.mxu0 0.0
  %270 = vmatprep.subr.mxu0 0.0
  %271 = vmatpush1.msra.mxu0 0.0
  %272 = vmatprep.subr.mxu0 0.0
  %273 = vmatpush1.msra.mxu0 0.0
  %274 = vmatprep.subr.mxu0 0.0
  %275 = vmatpush1.msra.mxu0 0.0
  %276 = vmatprep.subr.mxu0 0.0
  %277 = vmatpush1.msra.mxu0 0.0
  %278 = vmatprep.subr.mxu0 0.0
  %279 = vmatpush1.msra.mxu0 0.0
  %280 = vmatprep.subr.mxu0 0.0
  %281 = vmatpush1.msra.mxu0 0.0
  %282 = vmatprep.subr.mxu0 0.0
  %283 = vmatpush1.msra.mxu0 0.0
  %284 = vmatprep.subr.mxu0 0.0
  %285 = vmatpush1.msra.mxu0 0.0
  %286 = vmatprep.subr.mxu0 0.0
  %287 = vmatpush1.msra.mxu0 0.0
  %288 = vmatprep.subr.mxu0 0.0
  %289 = vmatpush1.msra.mxu0 0.0
  %290 = vmatprep.subr.mxu0 0.0
  %291 = vmatpush1.msra.mxu0 0.0
  %292 = vmatprep.subr.mxu0 0.0
  %293 = vmatpush1.msra.mxu0 0.0
  %294 = vmatprep.subr.mxu0 0.0
  %295 = vmatpush1.msra.mxu0 0.0
  %296 = vmatprep.subr.mxu0 0.0
  %297 = vmatpush1.msra.mxu0 0.0
  %298 = vmatprep.subr.mxu0 0.0
  %299 = vmatpush1.msra.mxu0 0.0
  %300 = vmatprep.subr.mxu0 0.0
  %301 = vmatpush1.msra.mxu0 0.0
  %302 = vmatprep.subr.mxu0 0.0
  %303 = vmatpush1.msra.mxu0 0.0
  %304 = vmatprep.subr.mxu0 0.0
  %305 = vmatpush1.msra.mxu0 0.0
  %306 = vmatprep.subr.mxu0 0.0
  %307 = vmatpush1.msra.mxu0 0.0
  %308 = vmatprep.subr.mxu0 0.0
  %309 = vmatpush1.msra.mxu0 0.0
  %310 = vmatprep.subr.mxu0 0.0
  %311 = vmatpush1.msra.mxu0 0.0
  %312 = vmatprep.subr.mxu0 0.0
  %313 = vmatpush1.msra.mxu0 0.0
  %314 = vmatprep.subr.mxu0 0.0
  %315 = vmatpush1.msra.mxu0 0.0
  %316 = vmatprep.subr.mxu0 0.0
  %317 = vmatpush1.msra.mxu0 0.0
  %318 = vmatprep.subr.mxu0 0.0
  %319 = vmatpush1.msra.mxu0 0.0
  %320 = vmatprep.mubr.f32.mxu0 0.0
  %321 = vmatmul.mubr.f32.gmra.mrb[0].mxu0 %v251
  %v322 = vpop.f32.mrb[0].mxu0
  %v323 = vadd.f32 0.0, %v322
  %v324 = vpop.f32.mrb[0].mxu0
  %325 = vmatprep.mubr.f32.mxu0 0.0
  %326 = vmatmul.mubr.f32.gmra.mrb[0].mxu0 %v254
  %v327 = vpop.f32.mrb[0].mxu0
  %v328 = vadd.f32 0.0, %v327
  %v329 = vpop.f32.mrb[0].mxu0
  %330 = vdwg.mxu0
  %331 = vmatprep.subr.mxu0 0.0
  %332 = vmatpush1.msra.mxu0 %v243
  %333 = vmatprep.subr.mxu0 0.0
  %334 = vmatpush1.msra.mxu0 %v244
  %335 = vmatprep.subr.mxu0 0.0
  %336 = vmatpush1.msra.mxu0 0.0
  %337 = vmatprep.subr.mxu0 0.0
  %338 = vmatpush1.msra.mxu0 0.0
  %339 = vmatprep.subr.mxu0 0.0
  %340 = vmatpush1.msra.mxu0 0.0
  %341 = vmatprep.subr.mxu0 0.0
  %342 = vmatpush1.msra.mxu0 0.0
  %343 = vmatprep.subr.mxu0 0.0
  %344 = vmatpush1.msra.mxu0 0.0
  %345 = vmatprep.subr.mxu0 0.0
  %346 = vmatpush1.msra.mxu0 0.0
  %347 = vmatprep.subr.mxu0 0.0
  %348 = vmatpush1.msra.mxu0 0.0
  %349 = vmatprep.subr.mxu0 0.0
  %350 = vmatpush1.msra.mxu0 0.0
  %351 = vmatprep.subr.mxu0 0.0
  %352 = vmatpush1.msra.mxu0 0.0
  %353 = vmatprep.subr.mxu0 0.0
  %354 = vmatpush1.msra.mxu0 0.0
  %355 = vmatprep.subr.mxu0 0.0
  %356 = vmatpush1.msra.mxu0 0.0
  %357 = vmatprep.subr.mxu0 0.0
  %358 = vmatpush1.msra.mxu0 0.0
  %359 = vmatprep.subr.mxu0 0.0
  %360 = vmatpush1.msra.mxu0 0.0
  %361 = vmatprep.subr.mxu0 0.0
  %362 = vmatpush1.msra.mxu0 0.0
  %363 = vmatprep.subr.mxu0 0.0
  %364 = vmatpush1.msra.mxu0 0.0
  %365 = vmatprep.subr.mxu0 0.0
  %366 = vmatpush1.msra.mxu0 0.0
  %367 = vmatprep.subr.mxu0 0.0
  %368 = vmatpush1.msra.mxu0 0.0
  %369 = vmatprep.subr.mxu0 0.0
  %370 = vmatpush1.msra.mxu0 0.0
  %371 = vmatprep.subr.mxu0 0.0
  %372 = vmatpush1.msra.mxu0 0.0
  %373 = vmatprep.subr.mxu0 0.0
  %374 = vmatpush1.msra.mxu0 0.0
  %375 = vmatprep.subr.mxu0 0.0
  %376 = vmatpush1.msra.mxu0 0.0
  %377 = vmatprep.subr.mxu0 0.0
  %378 = vmatpush1.msra.mxu0 0.0
  %379 = vmatprep.subr.mxu0 0.0
  %380 = vmatpush1.msra.mxu0 0.0
  %381 = vmatprep.subr.mxu0 0.0
  %382 = vmatpush1.msra.mxu0 0.0
  %383 = vmatprep.subr.mxu0 0.0
  %384 = vmatpush1.msra.mxu0 0.0
  %385 = vmatprep.subr.mxu0 0.0
  %386 = vmatpush1.msra.mxu0 0.0
  %387 = vmatprep.subr.mxu0 0.0
  %388 = vmatpush1.msra.mxu0 0.0
  %389 = vmatprep.subr.mxu0 0.0
  %390 = vmatpush1.msra.mxu0 0.0
  %391 = vmatprep.subr.mxu0 0.0
  %392 = vmatpush1.msra.mxu0 0.0
  %393 = vmatprep.subr.mxu0 0.0
  %394 = vmatpush1.msra.mxu0 0.0
  %395 = vmatprep.mubr.f32.mxu0 0.0
  %396 = vmatmul.mubr.f32.gmra.mrb[0].mxu0 %v144
  %v397 = vpop.f32.mrb[0].mxu0
  %v398 = vadd.f32 %v323, %v397
  %v399 = vpop.f32.mrb[0].mxu0
  %400 = vmatprep.mubr.f32.mxu0 0.0
  %401 = vmatmul.mubr.f32.gmra.mrb[0].mxu0 %v147
  %v402 = vpop.f32.mrb[0].mxu0
  %v403 = vadd.f32 %v328, %v402
  %v404 = vpop.f32.mrb[0].mxu0
  %405 = vdwg.mxu0
  %v406 = vld [vmem:[%s8] sm:$0x1]
  %v408 = vlaneseq
  %v409 = vshrl.u32 %v408, 7
  %v410 = vsub.s32 0, %v409
  %v411 = vrot.slane %v406, %v410
  %v413 = vadd.f32 %v398, %v411
  %v414 = vadd.f32 %v403, %v411
  %vm415 = vcmp.gt.f32.partialorder %v413, 0.0
  %vm416 = vcmp.gt.f32.partialorder %v414, 0.0
  %v417 = vmul.f32 %v413, 1.442695
  %v418 = vpow.pop %v417
  %v419 = vmul.f32 %v414, 1.442695
  %v420 = vpow.pop %v419
  %v421 = vsub.f32 %v418, 1.0
  %v422 = vsub.f32 %v420, 1.0
  %v423 = vsel %vm415, %v413, %v421
  %v424 = vsel %vm416, %v414, %v422
  %v425 = vld [vmem:[%s9] sm:$0xff]
  %v426 = vld [vmem:[%s9 + $0x8] sm:$0xff]
  %v427 = vld [vmem:[%s10] sm:$0xff]
  %v428 = vld [vmem:[%s10 + $0x8] sm:$0xff]
  %v429 = vld [vmem:[%s10 + $0x10] sm:$0xff]
  %v430 = vld [vmem:[%s10 + $0x18] sm:$0xff]
  %v432 = vsel %vm249, %v423, 0
  %v435 = vsel %vm249, %v424, 0
  %437 = vmatprep.subr.mxu0 0.0
  %438 = vmatpush1.msra.mxu0 %v427
  %439 = vmatprep.subr.mxu0 0.0
  %440 = vmatpush1.msra.mxu0 %v428
  %441 = vmatprep.subr.mxu0 0.0
  %442 = vmatpush1.msra.mxu0 %v429
  %443 = vmatprep.subr.mxu0 0.0
  %444 = vmatpush1.msra.mxu0 %v430
  %445 = vmatprep.subr.mxu0 0.0
  %446 = vmatpush1.msra.mxu0 0.0
  %447 = vmatprep.subr.mxu0 0.0
  %448 = vmatpush1.msra.mxu0 0.0
  %449 = vmatprep.subr.mxu0 0.0
  %450 = vmatpush1.msra.mxu0 0.0
  %451 = vmatprep.subr.mxu0 0.0
  %452 = vmatpush1.msra.mxu0 0.0
  %453 = vmatprep.subr.mxu0 0.0
  %454 = vmatpush1.msra.mxu0 0.0
  %455 = vmatprep.subr.mxu0 0.0
  %456 = vmatpush1.msra.mxu0 0.0
  %457 = vmatprep.subr.mxu0 0.0
  %458 = vmatpush1.msra.mxu0 0.0
  %459 = vmatprep.subr.mxu0 0.0
  %460 = vmatpush1.msra.mxu0 0.0
  %461 = vmatprep.subr.mxu0 0.0
  %462 = vmatpush1.msra.mxu0 0.0
  %463 = vmatprep.subr.mxu0 0.0
  %464 = vmatpush1.msra.mxu0 0.0
  %465 = vmatprep.subr.mxu0 0.0
  %466 = vmatpush1.msra.mxu0 0.0
  %467 = vmatprep.subr.mxu0 0.0
  %468 = vmatpush1.msra.mxu0 0.0
  %469 = vmatprep.subr.mxu0 0.0
  %470 = vmatpush1.msra.mxu0 0.0
  %471 = vmatprep.subr.mxu0 0.0
  %472 = vmatpush1.msra.mxu0 0.0
  %473 = vmatprep.subr.mxu0 0.0
  %474 = vmatpush1.msra.mxu0 0.0
  %475 = vmatprep.subr.mxu0 0.0
  %476 = vmatpush1.msra.mxu0 0.0
  %477 = vmatprep.subr.mxu0 0.0
  %478 = vmatpush1.msra.mxu0 0.0
  %479 = vmatprep.subr.mxu0 0.0
  %480 = vmatpush1.msra.mxu0 0.0
  %481 = vmatprep.subr.mxu0 0.0
  %482 = vmatpush1.msra.mxu0 0.0
  %483 = vmatprep.subr.mxu0 0.0
  %484 = vmatpush1.msra.mxu0 0.0
  %485 = vmatprep.subr.mxu0 0.0
  %486 = vmatpush1.msra.mxu0 0.0
  %487 = vmatprep.subr.mxu0 0.0
  %488 = vmatpush1.msra.mxu0 0.0
  %489 = vmatprep.subr.mxu0 0.0
  %490 = vmatpush1.msra.mxu0 0.0
  %491 = vmatprep.subr.mxu0 0.0
  %492 = vmatpush1.msra.mxu0 0.0
  %493 = vmatprep.subr.mxu0 0.0
  %494 = vmatpush1.msra.mxu0 0.0
  %495 = vmatprep.subr.mxu0 0.0
  %496 = vmatpush1.msra.mxu0 0.0
  %497 = vmatprep.subr.mxu0 0.0
  %498 = vmatpush1.msra.mxu0 0.0
  %499 = vmatprep.subr.mxu0 0.0
  %500 = vmatpush1.msra.mxu0 0.0
  %501 = vmatprep.mubr.f32.mxu0 0.0
  %502 = vmatmul.mubr.f32.gmra.mrb[0].mxu0 %v432
  %v503 = vpop.f32.mrb[0].mxu0
  %v504 = vadd.f32 0.0, %v503
  %v505 = vpop.f32.mrb[0].mxu0
  %506 = vmatprep.mubr.f32.mxu0 0.0
  %507 = vmatmul.mubr.f32.gmra.mrb[0].mxu0 %v435
  %v508 = vpop.f32.mrb[0].mxu0
  %v509 = vadd.f32 0.0, %v508
  %v510 = vpop.f32.mrb[0].mxu0
  %511 = vdwg.mxu0
  %512 = vmatprep.subr.mxu0 0.0
  %513 = vmatpush1.msra.mxu0 %v425
  %514 = vmatprep.subr.mxu0 0.0
  %515 = vmatpush1.msra.mxu0 %v426
  %516 = vmatprep.subr.mxu0 0.0
  %517 = vmatpush1.msra.mxu0 0.0
  %518 = vmatprep.subr.mxu0 0.0
  %519 = vmatpush1.msra.mxu0 0.0
  %520 = vmatprep.subr.mxu0 0.0
  %521 = vmatpush1.msra.mxu0 0.0
  %522 = vmatprep.subr.mxu0 0.0
  %523 = vmatpush1.msra.mxu0 0.0
  %524 = vmatprep.subr.mxu0 0.0
  %525 = vmatpush1.msra.mxu0 0.0
  %526 = vmatprep.subr.mxu0 0.0
  %527 = vmatpush1.msra.mxu0 0.0
  %528 = vmatprep.subr.mxu0 0.0
  %529 = vmatpush1.msra.mxu0 0.0
  %530 = vmatprep.subr.mxu0 0.0
  %531 = vmatpush1.msra.mxu0 0.0
  %532 = vmatprep.subr.mxu0 0.0
  %533 = vmatpush1.msra.mxu0 0.0
  %534 = vmatprep.subr.mxu0 0.0
  %535 = vmatpush1.msra.mxu0 0.0
  %536 = vmatprep.subr.mxu0 0.0
  %537 = vmatpush1.msra.mxu0 0.0
  %538 = vmatprep.subr.mxu0 0.0
  %539 = vmatpush1.msra.mxu0 0.0
  %540 = vmatprep.subr.mxu0 0.0
  %541 = vmatpush1.msra.mxu0 0.0
  %542 = vmatprep.subr.mxu0 0.0
  %543 = vmatpush1.msra.mxu0 0.0
  %544 = vmatprep.subr.mxu0 0.0
  %545 = vmatpush1.msra.mxu0 0.0
  %546 = vmatprep.subr.mxu0 0.0
  %547 = vmatpush1.msra.mxu0 0.0
  %548 = vmatprep.subr.mxu0 0.0
  %549 = vmatpush1.msra.mxu0 0.0
  %550 = vmatprep.subr.mxu0 0.0
  %551 = vmatpush1.msra.mxu0 0.0
  %552 = vmatprep.subr.mxu0 0.0
  %553 = vmatpush1.msra.mxu0 0.0
  %554 = vmatprep.subr.mxu0 0.0
  %555 = vmatpush1.msra.mxu0 0.0
  %556 = vmatprep.subr.mxu0 0.0
  %557 = vmatpush1.msra.mxu0 0.0
  %558 = vmatprep.subr.mxu0 0.0
  %559 = vmatpush1.msra.mxu0 0.0
  %560 = vmatprep.subr.mxu0 0.0
  %561 = vmatpush1.msra.mxu0 0.0
  %562 = vmatprep.subr.mxu0 0.0
  %563 = vmatpush1.msra.mxu0 0.0
  %564 = vmatprep.subr.mxu0 0.0
  %565 = vmatpush1.msra.mxu0 0.0
  %566 = vmatprep.subr.mxu0 0.0
  %567 = vmatpush1.msra.mxu0 0.0
  %568 = vmatprep.subr.mxu0 0.0
  %569 = vmatpush1.msra.mxu0 0.0
  %570 = vmatprep.subr.mxu0 0.0
  %571 = vmatpush1.msra.mxu0 0.0
  %572 = vmatprep.subr.mxu0 0.0
  %573 = vmatpush1.msra.mxu0 0.0
  %574 = vmatprep.subr.mxu0 0.0
  %575 = vmatpush1.msra.mxu0 0.0
  %576 = vmatprep.mubr.f32.mxu0 0.0
  %577 = vmatmul.mubr.f32.gmra.mrb[0].mxu0 %v144
  %v578 = vpop.f32.mrb[0].mxu0
  %v579 = vadd.f32 %v504, %v578
  %v580 = vpop.f32.mrb[0].mxu0
  %581 = vmatprep.mubr.f32.mxu0 0.0
  %582 = vmatmul.mubr.f32.gmra.mrb[0].mxu0 %v147
  %v583 = vpop.f32.mrb[0].mxu0
  %v584 = vadd.f32 %v509, %v583
  %v585 = vpop.f32.mrb[0].mxu0
  %586 = vdwg.mxu0
  %v587 = vld [vmem:[%s11] sm:$0x1]
  %v589 = vlaneseq
  %v590 = vshrl.u32 %v589, 7
  %v591 = vsub.s32 0, %v590
  %v592 = vrot.slane %v587, %v591
  %v594 = vadd.f32 %v579, %v592
  %v595 = vadd.f32 %v584, %v592
  %v596 = vld [vmem:[%s12] sm:$0xff]
  %v597 = vld [vmem:[%s12 + $0x8] sm:$0xff]
  %v598 = vld [vmem:[%s13] sm:$0xff]
  %v599 = vld [vmem:[%s13 + $0x8] sm:$0xff]
  %v600 = vld [vmem:[%s13 + $0x10] sm:$0xff]
  %v601 = vld [vmem:[%s13 + $0x18] sm:$0xff]
  %602 = vmatprep.subr.mxu0 0.0
  %603 = vmatpush1.msra.mxu0 %v598
  %604 = vmatprep.subr.mxu0 0.0
  %605 = vmatpush1.msra.mxu0 %v599
  %606 = vmatprep.subr.mxu0 0.0
  %607 = vmatpush1.msra.mxu0 %v600
  %608 = vmatprep.subr.mxu0 0.0
  %609 = vmatpush1.msra.mxu0 %v601
  %610 = vmatprep.subr.mxu0 0.0
  %611 = vmatpush1.msra.mxu0 0.0
  %612 = vmatprep.subr.mxu0 0.0
  %613 = vmatpush1.msra.mxu0 0.0
  %614 = vmatprep.subr.mxu0 0.0
  %615 = vmatpush1.msra.mxu0 0.0
  %616 = vmatprep.subr.mxu0 0.0
  %617 = vmatpush1.msra.mxu0 0.0
  %618 = vmatprep.subr.mxu0 0.0
  %619 = vmatpush1.msra.mxu0 0.0
  %620 = vmatprep.subr.mxu0 0.0
  %621 = vmatpush1.msra.mxu0 0.0
  %622 = vmatprep.subr.mxu0 0.0
  %623 = vmatpush1.msra.mxu0 0.0
  %624 = vmatprep.subr.mxu0 0.0
  %625 = vmatpush1.msra.mxu0 0.0
  %626 = vmatprep.subr.mxu0 0.0
  %627 = vmatpush1.msra.mxu0 0.0
  %628 = vmatprep.subr.mxu0 0.0
  %629 = vmatpush1.msra.mxu0 0.0
  %630 = vmatprep.subr.mxu0 0.0
  %631 = vmatpush1.msra.mxu0 0.0
  %632 = vmatprep.subr.mxu0 0.0
  %633 = vmatpush1.msra.mxu0 0.0
  %634 = vmatprep.subr.mxu0 0.0
  %635 = vmatpush1.msra.mxu0 0.0
  %636 = vmatprep.subr.mxu0 0.0
  %637 = vmatpush1.msra.mxu0 0.0
  %638 = vmatprep.subr.mxu0 0.0
  %639 = vmatpush1.msra.mxu0 0.0
  %640 = vmatprep.subr.mxu0 0.0
  %641 = vmatpush1.msra.mxu0 0.0
  %642 = vmatprep.subr.mxu0 0.0
  %643 = vmatpush1.msra.mxu0 0.0
  %644 = vmatprep.subr.mxu0 0.0
  %645 = vmatpush1.msra.mxu0 0.0
  %646 = vmatprep.subr.mxu0 0.0
  %647 = vmatpush1.msra.mxu0 0.0
  %648 = vmatprep.subr.mxu0 0.0
  %649 = vmatpush1.msra.mxu0 0.0
  %650 = vmatprep.subr.mxu0 0.0
  %651 = vmatpush1.msra.mxu0 0.0
  %652 = vmatprep.subr.mxu0 0.0
  %653 = vmatpush1.msra.mxu0 0.0
  %654 = vmatprep.subr.mxu0 0.0
  %655 = vmatpush1.msra.mxu0 0.0
  %656 = vmatprep.subr.mxu0 0.0
  %657 = vmatpush1.msra.mxu0 0.0
  %658 = vmatprep.subr.mxu0 0.0
  %659 = vmatpush1.msra.mxu0 0.0
  %660 = vmatprep.subr.mxu0 0.0
  %661 = vmatpush1.msra.mxu0 0.0
  %662 = vmatprep.subr.mxu0 0.0
  %663 = vmatpush1.msra.mxu0 0.0
  %664 = vmatprep.subr.mxu0 0.0
  %665 = vmatpush1.msra.mxu0 0.0
  %666 = vmatprep.mubr.f32.mxu0 0.0
  %667 = vmatmul.mubr.f32.gmra.mrb[0].mxu0 %v432
  %v668 = vpop.f32.mrb[0].mxu0
  %v669 = vadd.f32 0.0, %v668
  %v670 = vpop.f32.mrb[0].mxu0
  %671 = vmatprep.mubr.f32.mxu0 0.0
  %672 = vmatmul.mubr.f32.gmra.mrb[0].mxu0 %v435
  %v673 = vpop.f32.mrb[0].mxu0
  %v674 = vadd.f32 0.0, %v673
  %v675 = vpop.f32.mrb[0].mxu0
  %676 = vdwg.mxu0
  %677 = vmatprep.subr.mxu0 0.0
  %678 = vmatpush1.msra.mxu0 %v596
  %679 = vmatprep.subr.mxu0 0.0
  %680 = vmatpush1.msra.mxu0 %v597
  %681 = vmatprep.subr.mxu0 0.0
  %682 = vmatpush1.msra.mxu0 0.0
  %683 = vmatprep.subr.mxu0 0.0
  %684 = vmatpush1.msra.mxu0 0.0
  %685 = vmatprep.subr.mxu0 0.0
  %686 = vmatpush1.msra.mxu0 0.0
  %687 = vmatprep.subr.mxu0 0.0
  %688 = vmatpush1.msra.mxu0 0.0
  %689 = vmatprep.subr.mxu0 0.0
  %690 = vmatpush1.msra.mxu0 0.0
  %691 = vmatprep.subr.mxu0 0.0
  %692 = vmatpush1.msra.mxu0 0.0
  %693 = vmatprep.subr.mxu0 0.0
  %694 = vmatpush1.msra.mxu0 0.0
  %695 = vmatprep.subr.mxu0 0.0
  %696 = vmatpush1.msra.mxu0 0.0
  %697 = vmatprep.subr.mxu0 0.0
  %698 = vmatpush1.msra.mxu0 0.0
  %699 = vmatprep.subr.mxu0 0.0
  %700 = vmatpush1.msra.mxu0 0.0
  %701 = vmatprep.subr.mxu0 0.0
  %702 = vmatpush1.msra.mxu0 0.0
  %703 = vmatprep.subr.mxu0 0.0
  %704 = vmatpush1.msra.mxu0 0.0
  %705 = vmatprep.subr.mxu0 0.0
  %706 = vmatpush1.msra.mxu0 0.0
  %707 = vmatprep.subr.mxu0 0.0
  %708 = vmatpush1.msra.mxu0 0.0
  %709 = vmatprep.subr.mxu0 0.0
  %710 = vmatpush1.msra.mxu0 0.0
  %711 = vmatprep.subr.mxu0 0.0
  %712 = vmatpush1.msra.mxu0 0.0
  %713 = vmatprep.subr.mxu0 0.0
  %714 = vmatpush1.msra.mxu0 0.0
  %715 = vmatprep.subr.mxu0 0.0
  %716 = vmatpush1.msra.mxu0 0.0
  %717 = vmatprep.subr.mxu0 0.0
  %718 = vmatpush1.msra.mxu0 0.0
  %719 = vmatprep.subr.mxu0 0.0
  %720 = vmatpush1.msra.mxu0 0.0
  %721 = vmatprep.subr.mxu0 0.0
  %722 = vmatpush1.msra.mxu0 0.0
  %723 = vmatprep.subr.mxu0 0.0
  %724 = vmatpush1.msra.mxu0 0.0
  %725 = vmatprep.subr.mxu0 0.0
  %726 = vmatpush1.msra.mxu0 0.0
  %727 = vmatprep.subr.mxu0 0.0
  %728 = vmatpush1.msra.mxu0 0.0
  %729 = vmatprep.subr.mxu0 0.0
  %730 = vmatpush1.msra.mxu0 0.0
  %731 = vmatprep.subr.mxu0 0.0
  %732 = vmatpush1.msra.mxu0 0.0
  %733 = vmatprep.subr.mxu0 0.0
  %734 = vmatpush1.msra.mxu0 0.0
  %735 = vmatprep.subr.mxu0 0.0
  %736 = vmatpush1.msra.mxu0 0.0
  %737 = vmatprep.subr.mxu0 0.0
  %738 = vmatpush1.msra.mxu0 0.0
  %739 = vmatprep.subr.mxu0 0.0
  %740 = vmatpush1.msra.mxu0 0.0
  %741 = vmatprep.mubr.f32.mxu0 0.0
  %742 = vmatmul.mubr.f32.gmra.mrb[0].mxu0 %v144
  %v743 = vpop.f32.mrb[0].mxu0
  %v744 = vadd.f32 %v669, %v743
  %v745 = vpop.f32.mrb[0].mxu0
  %746 = vmatprep.mubr.f32.mxu0 0.0
  %747 = vmatmul.mubr.f32.gmra.mrb[0].mxu0 %v147
  %v748 = vpop.f32.mrb[0].mxu0
  %v749 = vadd.f32 %v674, %v748
  %v750 = vpop.f32.mrb[0].mxu0
  %751 = vdwg.mxu0
  %v752 = vld [vmem:[%s14] sm:$0x1]
  %v754 = vlaneseq
  %v755 = vshrl.u32 %v754, 7
  %v756 = vsub.s32 0, %v755
  %v757 = vrot.slane %v752, %v756
  %v759 = vadd.f32 %v744, %v757
  %v760 = vadd.f32 %v749, %v757
  %v761 = vmul.f32 %v594, 0.5
  %v762 = vmul.f32 %v595, 0.5
  %v763 = vtanh.pop %v761
  %v764 = vtanh.pop %v762
  %v765 = vmul.f32 %v763, 4.0
  %v766 = vmul.f32 %v764, 4.0
  %v767 = vmul.f32 %v759, 0.5
  %v768 = vmul.f32 %v760, 0.5
  %v769 = vtanh.pop %v767
  %v770 = vtanh.pop %v768
  %v771 = vmul.f32 %v769, 3.3
  %v772 = vmul.f32 %v770, 3.3
  %v773 = vsub.f32 %v771, 3.1
  %v774 = vsub.f32 %v772, 3.1
  %v775 = vmul.f32 %v773, 0.5
  %v776 = vmul.f32 %v774, 0.5
  %v777 = vmul.f32 %v775, 1.442695
  %v778 = vpow.pop %v777
  %v779 = vmul.f32 %v776, 1.442695
  %v780 = vpow.pop %v779
  %v781 = vld [vmem:[%s2] sm:$0xff]
  %v782 = vld [vmem:[%s2 + $0x8] sm:$0xff]
  %v783 = vmul.f32 %v781, %v778
  %v784 = vmul.f32 %v782, %v780
  %v785 = vadd.f32 %v765, %v783
  %v786 = vadd.f32 %v766, %v784
  %vm787 = vcmask 64512
  %788 = vst.msk [vmem:[%s15] sm:$0xff] %vm787, %v785
  %789 = vst.msk [vmem:[%s15 + $0x8] sm:$0xff] %vm787, %v786
  %790 = vst.msk [vmem:[%s16] sm:$0xff] %vm787, %v765
  %791 = vst.msk [vmem:[%s16 + $0x8] sm:$0xff] %vm787, %v766
  %792 = vst.msk [vmem:[%s17] sm:$0xff] %vm787, %v773
  %793 = vst.msk [vmem:[%s17 + $0x8] sm:$0xff] %vm787, %v774
  // Predicated region
  $region62: #{encoder_ipm_forward.1} parent=0 // pred_check
    _
  $region63: #{encoder_ipm_forward.1} parent=0 // pred_check_branch
    %795 = sbr.rel (0) target = $region65
  $region64: #{encoder_ipm_forward.1} parent=0 // pred_region
    _
  $region65: #{encoder_ipm_forward.1} parent=0 // pred_fallthru
    _
  // Predicated region
  $region66: #{encoder_ipm_forward.1} parent=0 // pred_check
    _
  $region67: #{encoder_ipm_forward.1} parent=0 // pred_check_branch
    %797 = sbr.rel (0) target = $region69
  $region68: #{encoder_ipm_forward.1} parent=0 // pred_region
    _
  $region69: #{encoder_ipm_forward.1} parent=0 // pred_fallthru
    _
  // Predicated region
  $region70: #{encoder_ipm_forward.1} parent=0 // pred_check
    _
  $region71: #{encoder_ipm_forward.1} parent=0 // pred_check_branch
    %799 = sbr.rel (0) target = $region73
  $region72: #{encoder_ipm_forward.1} parent=0 // pred_region
    _
  $region73: #{encoder_ipm_forward.1} parent=0 // pred_fallthru
    _
  // Predicated region
  $region74: #{encoder_ipm_forward.1} parent=0 // pred_check
    _
  $region75: #{encoder_ipm_forward.1} parent=0 // pred_check_branch
    %801 = sbr.rel (0) target = $region77
  $region76: #{encoder_ipm_forward.1} parent=0 // pred_region
    _
  $region77: #{encoder_ipm_forward.1} parent=0 // pred_fallthru
    _
  // Predicated region
  $region78: #{encoder_ipm_forward.1} parent=0 // pred_check
    _
  $region79: #{encoder_ipm_forward.1} parent=0 // pred_check_branch
    %803 = sbr.rel (0) target = $region81
  $region80: #{encoder_ipm_forward.1} parent=0 // pred_region
    _
  $region81: #{encoder_ipm_forward.1} parent=0 // pred_fallthru
    _
  // Predicated region
  $region82: #{encoder_ipm_forward.1} parent=0 // pred_check
    _
  $region83: #{encoder_ipm_forward.1} parent=0 // pred_check_branch
    %805 = sbr.rel (0) target = $region85
  $region84: #{encoder_ipm_forward.1} parent=0 // pred_region
    _
  $region85: #{encoder_ipm_forward.1} parent=0 // pred_fallthru
    _

</llo_original>
